<compile_context>
chip_gen: v7x
topology: tpu7x:2x2x1
jax: 0.10.0
libtpu: 0.0.40
codegen_flags: <defaults>
</compile_context>

<pallas_src>
import functools

import jax
import jax.numpy as jnp
from jax.experimental import pallas as pl
from jax.experimental.pallas import tpu as pltpu


def _round_up(x: int, m: int) -> int:
    return (x + m - 1) // m * m


# Target for pipeline buffers + f32 temporaries (per core).  Keeps us well
# inside v7x's 64 MiB physical VMEM with headroom; trivially fine on v5e/v6e.
_VMEM_BUDGET = 28 * 1024 * 1024


def _vmem_est(tm, E, D, J_pad, v_cols, in_isz, out_isz, wo_buffers, with_scratch):
    """Rough VMEM footprint: double-buffered pipeline buffers + f32 temps."""
    act = 2 * tm * (E + D) * in_isz            # xe + xd row tiles
    w_in = 2 * (E + D) * J_pad * 2             # We + Wd (bf16)
    wo = wo_buffers * J_pad * v_cols * 2       # W_out tile(s) (bf16)
    bias = 2 * (J_pad + v_cols) * 4
    outb = 2 * tm * v_cols * out_isz           # output tile
    tmp = tm * J_pad * 4 + tm * v_cols * 4     # f32 h / logits intermediates
    scr = tm * J_pad * 2 if with_scratch else 0
    return act + w_in + wo + bias + outb + tmp + scr


def _joiner_resident_kernel(xe_ref, xd_ref, we_ref, wd_ref, b_in_ref,
                            wo_ref, bo_ref, out_ref):
    """1-D grid over row tiles; all weights VMEM-resident (constant index_map)."""
    xe = xe_ref[...].astype(jnp.bfloat16)
    xd = xd_ref[...].astype(jnp.bfloat16)
    h = jnp.dot(xe, we_ref[...], preferred_element_type=jnp.float32)
    h = h + jnp.dot(xd, wd_ref[...], preferred_element_type=jnp.float32)
    h = jnp.tanh(h + b_in_ref[...]).astype(jnp.bfloat16)          # tanh in f32
    logits = jnp.dot(h, wo_ref[...], preferred_element_type=jnp.float32)
    out_ref[...] = (logits + bo_ref[...]).astype(out_ref.dtype)


def _joiner_tiled_kernel(xe_ref, xd_ref, we_ref, wd_ref, b_in_ref,
                         wo_ref, bo_ref, out_ref, h_scratch):
    """2-D grid (row tiles, vocab tiles).  The hidden activation is computed
    once per row tile (vocab program 0) and cached in a bf16 VMEM scratch.

    INVARIANT: the vocab axis must remain the innermost grid axis and be
    marked "arbitrary"; otherwise the h_scratch caching silently breaks.
    """
    @pl.when(pl.program_id(1) == 0)
    def _():
        xe = xe_ref[...].astype(jnp.bfloat16)
        xd = xd_ref[...].astype(jnp.bfloat16)
        h = jnp.dot(xe, we_ref[...], preferred_element_type=jnp.float32)
        h = h + jnp.dot(xd, wd_ref[...], preferred_element_type=jnp.float32)
        h_scratch[...] = jnp.tanh(h + b_in_ref[...]).astype(h_scratch.dtype)

    logits = jnp.dot(h_scratch[...], wo_ref[...],
                     preferred_element_type=jnp.float32)
    out_ref[...] = (logits + bo_ref[...]).astype(out_ref.dtype)


@functools.partial(
    jax.jit,
    static_argnames=("row_tile", "vocab_tile", "out_dtype", "force_tiled"))
def joiner_forward(encoder_out, decoder_out, params, *, row_tile=512,
                   vocab_tile=2048, out_dtype=None, force_tiled=False):
    """encoder_out: (N, T, S, E), decoder_out: (N, T, S, D) -> (N, T, S, V)."""
    we, be, wd, bd, wo, bo = params
    N, T, S, E = encoder_out.shape
    D = decoder_out.shape[-1]
    J = we.shape[1]
    V = wo.shape[1]
    M = N * T * S

    out_dt = encoder_out.dtype if out_dtype is None else out_dtype
    cdt = jnp.bfloat16
    in_isz = jnp.dtype(encoder_out.dtype).itemsize
    out_isz = jnp.dtype(out_dt).itemsize

    # ---- tile / padding selection ----------------------------------------
    J_pad = _round_up(J, 256)     # MXU-friendly on v6e/v7x; weights-only pad
    V_pad = _round_up(V, 128)     # lane-dense output, minimal slice padding

    tm = min(row_tile, _round_up(M, 8))
    if _round_up(M, tm) // tm < 2 and tm > 256:
        # Keep >= 2 row tiles so the "parallel" axis can feed both v7x TCs.
        tm = _round_up((M + 1) // 2, 8)
    # Pathologically wide inputs: shrink row tile until the floor config fits.
    while tm > 128 and _vmem_est(tm, E, D, J_pad, 128, in_isz, out_isz,
                                 3, True) > _VMEM_BUDGET:
        tm = max(128, _round_up(tm // 2, 8))
    M_pad = _round_up(M, tm)
    n_row = M_pad // tm

    resident = (not force_tiled) and (
        _vmem_est(tm, E, D, J_pad, V_pad, in_isz, out_isz, 2, False)
        <= _VMEM_BUDGET)

    if resident:
        tv = V_pad
        est = _vmem_est(tm, E, D, J_pad, tv, in_isz, out_isz, 2, False)
    else:
        tv = 128
        for cand in (2048, 1024, 512, 256):
            if cand > vocab_tile or V_pad % cand != 0:
                continue
            if _vmem_est(tm, E, D, J_pad, cand, in_isz, out_isz,
                         3, True) <= _VMEM_BUDGET:
                tv = cand
                break
        est = _vmem_est(tm, E, D, J_pad, tv, in_isz, out_isz, 3, True)

    # Explicit scoped-VMEM limit: above v5e's 16 MiB default, capped below
    # v7x's 64 MiB physical (v5e/v6e have 128 MiB physical).
    vmem_limit = int(min(48 * 1024 * 1024, max(32 * 1024 * 1024, est * 3 // 2)))

    # ---- parameters (weight-side padding only; cheap, one-time) ----------
    we_p = jnp.pad(we, ((0, 0), (0, J_pad - J))).astype(cdt)          # (E, J_pad)
    wd_p = jnp.pad(wd, ((0, 0), (0, J_pad - J))).astype(cdt)          # (D, J_pad)
    b_in = jnp.pad((be + bd).astype(jnp.float32), ((0, 0), (0, J_pad - J)))
    wo_p = jnp.pad(wo, ((0, J_pad - J), (0, V_pad - V))).astype(cdt)  # (J_pad, V_pad)
    bo_p = jnp.pad(bo.astype(jnp.float32), ((0, 0), (0, V_pad - V)))

    # Activations: reshape is free; rows are padded only if actually needed.
    xe = encoder_out.reshape(M, E)
    xd = decoder_out.reshape(M, D)
    if M_pad != M:
        xe = jnp.pad(xe, ((0, M_pad - M), (0, 0)))
        xd = jnp.pad(xd, ((0, M_pad - M), (0, 0)))

    wo_reads = (1 if resident else n_row) * J_pad * V_pad * 2
    cost = pl.CostEstimate(
        flops=2 * M_pad * (E + D) * J_pad + 2 * M_pad * J_pad * V_pad,
        transcendentals=M_pad * J_pad,
        bytes_accessed=int(M_pad * (E + D) * in_isz
                           + (E + D) * J_pad * 2 + wo_reads
                           + (J_pad + V_pad) * 4
                           + M_pad * V_pad * out_isz),
    )

    if resident:
        grid_spec = pltpu.PrefetchScalarGridSpec(
            num_scalar_prefetch=0,
            grid=(n_row,),
            in_specs=[
                pl.BlockSpec((tm, E), lambda i: (i, 0)),        # encoder rows (f32)
                pl.BlockSpec((tm, D), lambda i: (i, 0)),        # decoder rows (f32)
                pl.BlockSpec((E, J_pad), lambda i: (0, 0)),     # We (resident)
                pl.BlockSpec((D, J_pad), lambda i: (0, 0)),     # Wd (resident)
                pl.BlockSpec((1, J_pad), lambda i: (0, 0)),     # be+bd (resident)
                pl.BlockSpec((J_pad, V_pad), lambda i: (0, 0)), # W_out (resident)
                pl.BlockSpec((1, V_pad), lambda i: (0, 0)),     # b_out (resident)
            ],
            out_specs=pl.BlockSpec((tm, V_pad), lambda i: (i, 0)),
        )
        kernel = _joiner_resident_kernel
        dim_sem = ("parallel",)
    else:
        try:
            wo_spec = pl.BlockSpec((J_pad, tv), lambda i, j: (0, j),
                                   pipeline_mode=pl.Buffered(3))
        except TypeError:  # fallback if pipeline_mode is unavailable
            wo_spec = pl.BlockSpec((J_pad, tv), lambda i, j: (0, j))
        grid_spec = pltpu.PrefetchScalarGridSpec(
            num_scalar_prefetch=0,
            grid=(n_row, V_pad // tv),
            in_specs=[
                pl.BlockSpec((tm, E), lambda i, j: (i, 0)),
                pl.BlockSpec((tm, D), lambda i, j: (i, 0)),
                pl.BlockSpec((E, J_pad), lambda i, j: (0, 0)),
                pl.BlockSpec((D, J_pad), lambda i, j: (0, 0)),
                pl.BlockSpec((1, J_pad), lambda i, j: (0, 0)),
                wo_spec,                                         # W_out vocab tile
                pl.BlockSpec((1, tv), lambda i, j: (0, j)),      # b_out vocab tile
            ],
            out_specs=pl.BlockSpec((tm, tv), lambda i, j: (i, j)),
            scratch_shapes=[pltpu.VMEM((tm, J_pad), cdt)],       # cached hidden
        )
        kernel = _joiner_tiled_kernel
        dim_sem = ("parallel", "arbitrary")  # vocab axis carries h_scratch

    out2d = pl.pallas_call(
        kernel,
        out_shape=jax.ShapeDtypeStruct((M_pad, V_pad), out_dt),
        grid_spec=grid_spec,
        compiler_params=pltpu.CompilerParams(
            dimension_semantics=dim_sem,
            vmem_limit_bytes=vmem_limit,
        ),
        cost_estimate=cost,
    )(xe, xd, we_p, wd_p, b_in, wo_p, bo_p)

    if M_pad != M or V_pad != V:
        out2d = out2d[:M, :V]  # only copies when padding was actually added
    return out2d.reshape(N, T, S, V)


def init_joiner_params(key, encoder_dim, decoder_dim, joiner_dim, vocab_size,
                       dtype=jnp.float32):
    """kaiming_normal_(nonlinearity='linear') => N(0, 1/fan_in); zero biases.
    Weights stored as (in_features, out_features)."""
    k1, k2, k3 = jax.random.split(key, 3)
    we = jax.random.normal(k1, (encoder_dim, joiner_dim), dtype) / jnp.sqrt(
        jnp.asarray(encoder_dim, dtype))
    wd = jax.random.normal(k2, (decoder_dim, joiner_dim), dtype) / jnp.sqrt(
        jnp.asarray(decoder_dim, dtype))
    wo = jax.random.normal(k3, (joiner_dim, vocab_size), dtype) / jnp.sqrt(
        jnp.asarray(joiner_dim, dtype))
    be = jnp.zeros((1, joiner_dim), dtype)
    bd = jnp.zeros((1, joiner_dim), dtype)
    bo = jnp.zeros((1, vocab_size), dtype)
    return (we, be, wd, bd, wo, bo)


def _reference_f32(encoder_out, decoder_out, params):
    we, be, wd, bd, wo, bo = params
    h = jnp.tanh(encoder_out @ we + be + decoder_out @ wd + bd)
    return h @ wo + bo


def _reference_bf16(encoder_out, decoder_out, params):
    """Mirrors the kernel's bf16-operand / f32-accumulate / f32-tanh math."""
    we, be, wd, bd, wo, bo = params
    N, T, S, E = encoder_out.shape
    D = decoder_out.shape[-1]
    xe = encoder_out.reshape(-1, E).astype(jnp.bfloat16)
    xd = decoder_out.reshape(-1, D).astype(jnp.bfloat16)
    h = (jnp.dot(xe, we.astype(jnp.bfloat16), preferred_element_type=jnp.float32)
         + jnp.dot(xd, wd.astype(jnp.bfloat16), preferred_element_type=jnp.float32)
         + (be + bd))
    h = jnp.tanh(h).astype(jnp.bfloat16)
    logits = jnp.dot(h, wo.astype(jnp.bfloat16),
                     preferred_element_type=jnp.float32) + bo
    return logits.reshape(N, T, S, -1).astype(encoder_out.dtype)


if __name__ == "__main__":
    # Small shapes consistent with the module's forward contract.
    N, T, S = 2, 4, 3
    encoder_dim, decoder_dim, joiner_dim, vocab_size = 16, 24, 32, 256

    key = jax.random.PRNGKey(0)
    k_enc, k_dec, k_par = jax.random.split(key, 3)

    encoder_out = jax.random.normal(k_enc, (N, T, S, encoder_dim), jnp.float32)
    decoder_out = jax.random.normal(k_dec, (N, T, S, decoder_dim), jnp.float32)
    params = init_joiner_params(k_par, encoder_dim, decoder_dim, joiner_dim,
                                vocab_size)

    ref_q = _reference_bf16(encoder_out, decoder_out, params)
    ref_f = _reference_f32(encoder_out, decoder_out, params)

    # Path 1: resident-W_out, 1-D row grid (default for small/medium vocab).
    out = jax.block_until_ready(joiner_forward(encoder_out, decoder_out, params))
    assert out.shape == (N, T, S, vocab_size), out.shape
    assert jnp.allclose(out, ref_q, atol=2e-3, rtol=2e-3), "resident: bf16 ref mismatch"
    assert jnp.allclose(out, ref_f, atol=6e-2, rtol=6e-2), "resident: f32 ref mismatch"

    # Path 2: vocab-tiled 2-D grid with cached hidden (used for large vocab).
    out_t = jax.block_until_ready(
        joiner_forward(encoder_out, decoder_out, params, force_tiled=True))
    assert out_t.shape == (N, T, S, vocab_size), out_t.shape
    assert jnp.allclose(out_t, ref_q, atol=2e-3, rtol=2e-3), "tiled: bf16 ref mismatch"
    assert jnp.allclose(out_t, ref_f, atol=6e-2, rtol=6e-2), "tiled: f32 ref mismatch"

    print("KERNEL_OK")
</pallas_src>

<mosaic_0001>
module attributes {stable_mosaic.version = 11 : i64} {
  func.func @_joiner_resident_kernel(%arg0: i32, %arg1: memref<24x16xf32, #tpu.memory_space<vmem>>, %arg2: memref<24x24xf32, #tpu.memory_space<vmem>>, %arg3: memref<16x256xbf16, #tpu.memory_space<vmem>>, %arg4: memref<24x256xbf16, #tpu.memory_space<vmem>>, %arg5: memref<1x256xf32, #tpu.memory_space<vmem>>, %arg6: memref<256x256xbf16, #tpu.memory_space<vmem>>, %arg7: memref<1x256xf32, #tpu.memory_space<vmem>>, %arg8: memref<24x256xf32, #tpu.memory_space<vmem>>) attributes {dimension_semantics = [#tpu.dimension_semantics<parallel>], iteration_bounds = array<i64: 1>, scalar_prefetch = 0 : i64, scratch_operands = 0 : i64, tpu.core_type = #tpu.core_type<tc>, window_params = [{transform_indices = @transform_0, window_bounds = array<i64: 24, 16>}, {transform_indices = @transform_1, window_bounds = array<i64: 24, 24>}, {pipeline_mode = #tpu.pipeline_mode<synchronous>, transform_indices = @transform_2, window_bounds = array<i64: 16, 256>}, {pipeline_mode = #tpu.pipeline_mode<synchronous>, transform_indices = @transform_3, window_bounds = array<i64: 24, 256>}, {pipeline_mode = #tpu.pipeline_mode<synchronous>, transform_indices = @transform_4, window_bounds = array<i64: 1, 256>}, {pipeline_mode = #tpu.pipeline_mode<synchronous>, transform_indices = @transform_5, window_bounds = array<i64: 256, 256>}, {pipeline_mode = #tpu.pipeline_mode<synchronous>, transform_indices = @transform_6, window_bounds = array<i64: 1, 256>}, {transform_indices = @transform_7, window_bounds = array<i64: 24, 256>}]} {
    %c0 = arith.constant 0 : index
    %c0_0 = arith.constant 0 : index
    %0 = vector.load %arg1[%c0, %c0_0] : memref<24x16xf32, #tpu.memory_space<vmem>>, vector<24x16xf32>
    %1 = arith.truncf %0 : vector<24x16xf32> to vector<24x16xbf16>
    %c0_1 = arith.constant 0 : index
    %c0_2 = arith.constant 0 : index
    %2 = vector.load %arg2[%c0_1, %c0_2] : memref<24x24xf32, #tpu.memory_space<vmem>>, vector<24x24xf32>
    %3 = arith.truncf %2 : vector<24x24xf32> to vector<24x24xbf16>
    %c0_3 = arith.constant 0 : index
    %c0_4 = arith.constant 0 : index
    %4 = vector.load %arg3[%c0_3, %c0_4] : memref<16x256xbf16, #tpu.memory_space<vmem>>, vector<16x256xbf16>
    %cst = arith.constant dense<0.000000e+00> : vector<24x256xf32>
    %5 = tpu.matmul %1, %4, %cst {dimension_numbers = #tpu.dot_dimension_numbers<[1], [0], [0], [1], [0, 0, 1, 1], [], []>} : vector<24x16xbf16>, vector<16x256xbf16>, vector<24x256xf32> -> vector<24x256xf32>
    %c0_5 = arith.constant 0 : index
    %c0_6 = arith.constant 0 : index
    %6 = vector.load %arg4[%c0_5, %c0_6] : memref<24x256xbf16, #tpu.memory_space<vmem>>, vector<24x256xbf16>
    %cst_7 = arith.constant dense<0.000000e+00> : vector<24x256xf32>
    %7 = tpu.matmul %3, %6, %cst_7 {dimension_numbers = #tpu.dot_dimension_numbers<[1], [0], [0], [1], [0, 0, 1, 1], [], []>} : vector<24x24xbf16>, vector<24x256xbf16>, vector<24x256xf32> -> vector<24x256xf32>
    %8 = arith.addf %5, %7 : vector<24x256xf32>
    %c0_8 = arith.constant 0 : index
    %c0_9 = arith.constant 0 : index
    %9 = vector.load %arg5[%c0_8, %c0_9] : memref<1x256xf32, #tpu.memory_space<vmem>>, vector<1x256xf32>
    %10 = vector.broadcast %9 : vector<1x256xf32> to vector<24x256xf32>
    %11 = arith.addf %8, %10 : vector<24x256xf32>
    %12 = math.tanh %11 : vector<24x256xf32>
    %13 = arith.truncf %12 : vector<24x256xf32> to vector<24x256xbf16>
    %c0_10 = arith.constant 0 : index
    %c0_11 = arith.constant 0 : index
    %14 = vector.load %arg6[%c0_10, %c0_11] : memref<256x256xbf16, #tpu.memory_space<vmem>>, vector<256x256xbf16>
    %cst_12 = arith.constant dense<0.000000e+00> : vector<24x256xf32>
    %15 = tpu.matmul %13, %14, %cst_12 {dimension_numbers = #tpu.dot_dimension_numbers<[1], [0], [0], [1], [0, 0, 1, 1], [], []>} : vector<24x256xbf16>, vector<256x256xbf16>, vector<24x256xf32> -> vector<24x256xf32>
    %c0_13 = arith.constant 0 : index
    %c0_14 = arith.constant 0 : index
    %16 = vector.load %arg7[%c0_13, %c0_14] : memref<1x256xf32, #tpu.memory_space<vmem>>, vector<1x256xf32>
    %17 = vector.broadcast %16 : vector<1x256xf32> to vector<24x256xf32>
    %18 = arith.addf %15, %17 : vector<24x256xf32>
    %c0_15 = arith.constant 0 : index
    %c0_16 = arith.constant 0 : index
    %19 = vector.load %arg8[%c0_15, %c0_16] : memref<24x256xf32, #tpu.memory_space<vmem>>, vector<24x256xf32>
    tpu.vector_store %arg8[%c0_15, %c0_16], %18 {strides = array<i32>} : memref<24x256xf32, #tpu.memory_space<vmem>>, vector<24x256xf32>,
    return
  }
  func.func @transform_0(%arg0: i32) -> (i32, i32) {
    %c0_i32 = arith.constant 0 : i32
    %c0_i32_0 = arith.constant 0 : i32
    return %arg0, %c0_i32 : i32, i32
  }
  func.func @transform_1(%arg0: i32) -> (i32, i32) {
    %c0_i32 = arith.constant 0 : i32
    %c0_i32_0 = arith.constant 0 : i32
    return %arg0, %c0_i32 : i32, i32
  }
  func.func @transform_2(%arg0: i32) -> (i32, i32) {
    %c0_i32 = arith.constant 0 : i32
    %c0_i32_0 = arith.constant 0 : i32
    %c0_i32_1 = arith.constant 0 : i32
    return %c0_i32, %c0_i32_0 : i32, i32
  }
  func.func @transform_3(%arg0: i32) -> (i32, i32) {
    %c0_i32 = arith.constant 0 : i32
    %c0_i32_0 = arith.constant 0 : i32
    %c0_i32_1 = arith.constant 0 : i32
    return %c0_i32, %c0_i32_0 : i32, i32
  }
  func.func @transform_4(%arg0: i32) -> (i32, i32) {
    %c0_i32 = arith.constant 0 : i32
    %c0_i32_0 = arith.constant 0 : i32
    %c0_i32_1 = arith.constant 0 : i32
    return %c0_i32, %c0_i32_0 : i32, i32
  }
  func.func @transform_5(%arg0: i32) -> (i32, i32) {
    %c0_i32 = arith.constant 0 : i32
    %c0_i32_0 = arith.constant 0 : i32
    %c0_i32_1 = arith.constant 0 : i32
    return %c0_i32, %c0_i32_0 : i32, i32
  }
  func.func @transform_6(%arg0: i32) -> (i32, i32) {
    %c0_i32 = arith.constant 0 : i32
    %c0_i32_0 = arith.constant 0 : i32
    %c0_i32_1 = arith.constant 0 : i32
    return %c0_i32, %c0_i32_0 : i32, i32
  }
  func.func @transform_7(%arg0: i32) -> (i32, i32) {
    %c0_i32 = arith.constant 0 : i32
    %c0_i32_0 = arith.constant 0 : i32
    return %arg0, %c0_i32 : i32, i32
  }
}

</mosaic_0001>

<llo_original>
// kernel: joiner_forward.1
$region0: #{joiner_forward.1}
  #allocation0 [shape = 'u32[]', space=smem, size = 0x4, offset = 0x4, fixed_abs, tag = 'smem constant byte address 0x4 - core index']
  #allocation1 [shape = 'u32[144,128]{1,0:T(1,128)}', space=vmem, size = 0x12000, scoped, tag = 'internal scratch']
  %s0 = inlined_call_operand.vmem [shape: f32[24,16], index: 0, kind: input, shape index: {}]
  %s1 = inlined_call_operand.vmem [shape: f32[24,24], index: 1, kind: input, shape index: {}]
  %s2 = inlined_call_operand.vmem [shape: bf16[16,256], index: 2, kind: input, shape index: {}]
  %s3 = inlined_call_operand.vmem [shape: bf16[24,256], index: 3, kind: input, shape index: {}]
  %s4 = inlined_call_operand.vmem [shape: f32[1,256], index: 4, kind: input, shape index: {}]
  %s5 = inlined_call_operand.vmem [shape: bf16[256,256], index: 5, kind: input, shape index: {}]
  %s6 = inlined_call_operand.vmem [shape: f32[1,256], index: 6, kind: input, shape index: {}]
  %s7 = inlined_call_operand.vmem [shape: f32[24,256], index: 7, kind: output, shape index: {}]
  %s8 = sld [smem:[#allocation0]]
  $region38: #{joiner_forward.1} parent=0
    _
  %s10 = ssub.s32 1, %s8
  %s11 = scalar_select 0, %s10, %s8
  // Predicated region
  $region2: #{joiner_forward.1} parent=0 // pred_check
    _
  $region3: #{joiner_forward.1} parent=0 // pred_check_branch
    %13 = sbr.rel (0) target = $region5
  $region4: #{joiner_forward.1} parent=0 // pred_region
    _
  $region5: #{joiner_forward.1} parent=0 // pred_fallthru
    _
  // Predicated region
  $region6: #{joiner_forward.1} parent=0 // pred_check
    _
  $region7: #{joiner_forward.1} parent=0 // pred_check_branch
    %15 = sbr.rel (0) target = $region9
  $region8: #{joiner_forward.1} parent=0 // pred_region
    _
  $region9: #{joiner_forward.1} parent=0 // pred_fallthru
    _
  // Predicated region
  $region10: #{joiner_forward.1} parent=0 // pred_check
    _
  $region11: #{joiner_forward.1} parent=0 // pred_check_branch
    %17 = sbr.rel (0) target = $region13
  $region12: #{joiner_forward.1} parent=0 // pred_region
    _
  $region13: #{joiner_forward.1} parent=0 // pred_fallthru
    _
  // Predicated region
  $region14: #{joiner_forward.1} parent=0 // pred_check
    _
  $region15: #{joiner_forward.1} parent=0 // pred_check_branch
    %19 = sbr.rel (0) target = $region17
  $region16: #{joiner_forward.1} parent=0 // pred_region
    _
  $region17: #{joiner_forward.1} parent=0 // pred_fallthru
    _
  // Predicated region
  $region18: #{joiner_forward.1} parent=0 // pred_check
    _
  $region19: #{joiner_forward.1} parent=0 // pred_check_branch
    %21 = sbr.rel (0) target = $region21
  $region20: #{joiner_forward.1} parent=0 // pred_region
    _
  $region21: #{joiner_forward.1} parent=0 // pred_fallthru
    _
  // Predicated region
  $region22: #{joiner_forward.1} parent=0 // pred_check
    _
  $region23: #{joiner_forward.1} parent=0 // pred_check_branch
    %23 = sbr.rel (0) target = $region25
  $region24: #{joiner_forward.1} parent=0 // pred_region
    _
  $region25: #{joiner_forward.1} parent=0 // pred_fallthru
    _
  // Predicated region
  $region26: #{joiner_forward.1} parent=0 // pred_check
    _
  $region27: #{joiner_forward.1} parent=0 // pred_check_branch
    %25 = sbr.rel (0) target = $region29
  $region28: #{joiner_forward.1} parent=0 // pred_region
    _
  $region29: #{joiner_forward.1} parent=0 // pred_fallthru
    _
  %v27 = vld [vmem:[%s0] sm:$0xff]
  %v28 = vld [vmem:[%s0 + $0x8] sm:$0xff]
  %v29 = vld [vmem:[%s0 + $0x10] sm:$0xff]
  %v30 = vpack.c.bf16 %v28, %v27
  %v31 = vpack.c.bf16 %v29, %v29
  %v32 = vld [vmem:[%s1] sm:$0xff]
  %v33 = vld [vmem:[%s1 + $0x8] sm:$0xff]
  %v34 = vld [vmem:[%s1 + $0x10] sm:$0xff]
  %v35 = vpack.c.bf16 %v33, %v32
  %v36 = vpack.c.bf16 %v34, %v34
  %v37 = vld [vmem:[%s2] sm:$0xff]
  %v38 = vld [vmem:[%s2 + $0x8] sm:$0xff]
  %v39 = vld [vmem:[%s3] sm:$0xff]
  %v40 = vld [vmem:[%s3 + $0x8] sm:$0xff]
  %v41 = vld [vmem:[%s3 + $0x10] sm:$0xff]
  %v45 = vunpack.c.l.b16 %v39
  %v46 = vunpack.c.h.b16 %v39
  %v47 = vunpack.c.l.b16 %v40
  %v48 = vunpack.c.h.b16 %v40
  %v49 = vunpack.c.l.b16 %v41
  %v50 = vunpack.c.h.b16 %v41
  %v51 = vpack.c.b16 %v47, %v45
  %v52 = vpack.c.b16 %v48, %v46
  %v53 = vpack.c.b16 %v49, %v49
  %v54 = vpack.c.b16 %v50, %v50
  %vm57 = vcmask 195584
  %v59 = vsel %vm57, %v35, 0
  %v62 = vsel %vm57, %v36, 0
  %vm64 = vcmask 1043456
  %v66 = vsel %vm64, %v53, 0
  %v69 = vsel %vm64, %v54, 0
  %71 = vmatprep.subr.bf16.mxu0 %v52
  %72 = vmatpush1.bf16.msra.mxu0 %v51
  %73 = vmatprep.subr.bf16.mxu0 %v69
  %74 = vmatpush1.bf16.msra.mxu0 %v66
  %75 = vmatprep.subr.bf16.mxu0 0
  %76 = vmatpush1.bf16.msra.mxu0 0
  %77 = vmatprep.subr.bf16.mxu0 0
  %78 = vmatpush1.bf16.msra.mxu0 0
  %79 = vmatprep.subr.bf16.mxu0 0
  %80 = vmatpush1.bf16.msra.mxu0 0
  %81 = vmatprep.subr.bf16.mxu0 0
  %82 = vmatpush1.bf16.msra.mxu0 0
  %83 = vmatprep.subr.bf16.mxu0 0
  %84 = vmatpush1.bf16.msra.mxu0 0
  %85 = vmatprep.subr.bf16.mxu0 0
  %86 = vmatpush1.bf16.msra.mxu0 0
  %87 = vmatprep.subr.bf16.mxu0 0
  %88 = vmatpush1.bf16.msra.mxu0 0
  %89 = vmatprep.subr.bf16.mxu0 0
  %90 = vmatpush1.bf16.msra.mxu0 0
  %91 = vmatprep.subr.bf16.mxu0 0
  %92 = vmatpush1.bf16.msra.mxu0 0
  %93 = vmatprep.subr.bf16.mxu0 0
  %94 = vmatpush1.bf16.msra.mxu0 0
  %95 = vmatprep.subr.bf16.mxu0 0
  %96 = vmatpush1.bf16.msra.mxu0 0
  %97 = vmatprep.subr.bf16.mxu0 0
  %98 = vmatpush1.bf16.msra.mxu0 0
  %99 = vmatprep.subr.bf16.mxu0 0
  %100 = vmatpush1.bf16.msra.mxu0 0
  %101 = vmatprep.subr.bf16.mxu0 0
  %102 = vmatpush1.bf16.msra.mxu0 0
  %103 = vmatprep.mubr.bf16.mxu0 0
  %104 = vmatmul.mubr.bf16.gmra.mrb[0].mxu0 %v59
  %v105 = vpop.f32.mrb[0].mxu0
  %v106 = vadd.f32 0.0, %v105
  %v107 = vpop.f32.mrb[0].mxu0
  %v108 = vadd.f32 0.0, %v107
  %v109 = vpop.f32.mrb[0].mxu0
  %v110 = vadd.f32 0.0, %v109
  %v111 = vpop.f32.mrb[0].mxu0
  %v112 = vadd.f32 0.0, %v111
  %113 = vmatprep.mubr.bf16.mxu0 0
  %114 = vmatmul.mubr.bf16.gmra.mrb[0].mxu0 %v62
  %v115 = vpop.f32.mrb[0].mxu0
  %v116 = vadd.f32 0.0, %v115
  %v117 = vpop.f32.mrb[0].mxu0
  %v118 = vadd.f32 0.0, %v117
  %v119 = vpop.f32.mrb[0].mxu0
  %v120 = vpop.f32.mrb[0].mxu0
  %121 = vdwg.mxu0
  %v124 = vunpack.c.l.b16 %v37
  %v125 = vunpack.c.h.b16 %v37
  %v126 = vunpack.c.l.b16 %v38
  %v127 = vunpack.c.h.b16 %v38
  %v128 = vpack.c.b16 %v126, %v124
  %v129 = vpack.c.b16 %v127, %v125
  %vm132 = vcmask 130048
  %v134 = vsel %vm132, %v30, 0
  %v137 = vsel %vm132, %v31, 0
  %139 = vmatprep.subr.bf16.mxu0 %v129
  %140 = vmatpush1.bf16.msra.mxu0 %v128
  %141 = vmatprep.subr.bf16.mxu0 0
  %142 = vmatpush1.bf16.msra.mxu0 0
  %143 = vmatprep.subr.bf16.mxu0 0
  %144 = vmatpush1.bf16.msra.mxu0 0
  %145 = vmatprep.subr.bf16.mxu0 0
  %146 = vmatpush1.bf16.msra.mxu0 0
  %147 = vmatprep.subr.bf16.mxu0 0
  %148 = vmatpush1.bf16.msra.mxu0 0
  %149 = vmatprep.subr.bf16.mxu0 0
  %150 = vmatpush1.bf16.msra.mxu0 0
  %151 = vmatprep.subr.bf16.mxu0 0
  %152 = vmatpush1.bf16.msra.mxu0 0
  %153 = vmatprep.subr.bf16.mxu0 0
  %154 = vmatpush1.bf16.msra.mxu0 0
  %155 = vmatprep.subr.bf16.mxu0 0
  %156 = vmatpush1.bf16.msra.mxu0 0
  %157 = vmatprep.subr.bf16.mxu0 0
  %158 = vmatpush1.bf16.msra.mxu0 0
  %159 = vmatprep.subr.bf16.mxu0 0
  %160 = vmatpush1.bf16.msra.mxu0 0
  %161 = vmatprep.subr.bf16.mxu0 0
  %162 = vmatpush1.bf16.msra.mxu0 0
  %163 = vmatprep.subr.bf16.mxu0 0
  %164 = vmatpush1.bf16.msra.mxu0 0
  %165 = vmatprep.subr.bf16.mxu0 0
  %166 = vmatpush1.bf16.msra.mxu0 0
  %167 = vmatprep.subr.bf16.mxu0 0
  %168 = vmatpush1.bf16.msra.mxu0 0
  %169 = vmatprep.subr.bf16.mxu0 0
  %170 = vmatpush1.bf16.msra.mxu0 0
  %171 = vmatprep.mubr.bf16.mxu0 0
  %172 = vmatmul.mubr.bf16.gmra.mrb[0].mxu0 %v134
  %v173 = vpop.f32.mrb[0].mxu0
  %v174 = vadd.f32 %v106, %v173
  %v175 = vpop.f32.mrb[0].mxu0
  %v176 = vadd.f32 %v108, %v175
  %v177 = vpop.f32.mrb[0].mxu0
  %v178 = vadd.f32 %v110, %v177
  %v179 = vpop.f32.mrb[0].mxu0
  %v180 = vadd.f32 %v112, %v179
  %181 = vmatprep.mubr.bf16.mxu0 0
  %182 = vmatmul.mubr.bf16.gmra.mrb[0].mxu0 %v137
  %v183 = vpop.f32.mrb[0].mxu0
  %v184 = vadd.f32 %v116, %v183
  %v185 = vpop.f32.mrb[0].mxu0
  %v186 = vadd.f32 %v118, %v185
  %v187 = vpop.f32.mrb[0].mxu0
  %v188 = vpop.f32.mrb[0].mxu0
  %189 = vdwg.mxu0
  %v190 = vld [vmem:[%s4] sm:$0x3]
  %v192 = vlaneseq
  %v193 = vshrl.u32 %v192, 7
  %v194 = vsub.s32 0, %v193
  %v195 = vrot.slane %v190, %v194
  %v196 = vlaneseq
  %v197 = vshrl.u32 %v196, 7
  %v198 = vsub.s32 1, %v197
  %v199 = vrot.slane %v190, %v198
  %v202 = vadd.f32 %v174, %v195
  %v203 = vadd.f32 %v176, %v199
  %v204 = vadd.f32 %v178, %v195
  %v205 = vadd.f32 %v180, %v199
  %v206 = vadd.f32 %v184, %v195
  %v207 = vadd.f32 %v186, %v199
  %v208 = vtanh.pop %v202
  %v209 = vtanh.pop %v203
  %v210 = vtanh.pop %v204
  %v211 = vtanh.pop %v205
  %v212 = vtanh.pop %v206
  %v213 = vtanh.pop %v207
  %v214 = vpack.c.bf16 %v210, %v208
  %v215 = vpack.c.bf16 %v211, %v209
  %v216 = vpack.c.bf16 %v212, %v212
  %v217 = vpack.c.bf16 %v213, %v213
  %v218 = vld [vmem:[%s5] sm:$0xff]
  %v219 = vld [vmem:[%s5 + $0x8] sm:$0xff]
  %v220 = vld [vmem:[%s5 + $0x10] sm:$0xff]
  %v221 = vld [vmem:[%s5 + $0x18] sm:$0xff]
  %v222 = vld [vmem:[%s5 + $0x20] sm:$0xff]
  %v223 = vld [vmem:[%s5 + $0x28] sm:$0xff]
  %v224 = vld [vmem:[%s5 + $0x30] sm:$0xff]
  %v225 = vld [vmem:[%s5 + $0x38] sm:$0xff]
  %v226 = vld [vmem:[%s5 + $0x40] sm:$0xff]
  %v227 = vld [vmem:[%s5 + $0x48] sm:$0xff]
  %v228 = vld [vmem:[%s5 + $0x50] sm:$0xff]
  %v229 = vld [vmem:[%s5 + $0x58] sm:$0xff]
  %v230 = vld [vmem:[%s5 + $0x60] sm:$0xff]
  %v231 = vld [vmem:[%s5 + $0x68] sm:$0xff]
  %v232 = vld [vmem:[%s5 + $0x70] sm:$0xff]
  %v233 = vld [vmem:[%s5 + $0x78] sm:$0xff]
  %v234 = vld [vmem:[%s5 + $0x80] sm:$0xff]
  %v235 = vld [vmem:[%s5 + $0x88] sm:$0xff]
  %v236 = vld [vmem:[%s5 + $0x90] sm:$0xff]
  %v237 = vld [vmem:[%s5 + $0x98] sm:$0xff]
  %v238 = vld [vmem:[%s5 + $0xa0] sm:$0xff]
  %v239 = vld [vmem:[%s5 + $0xa8] sm:$0xff]
  %v240 = vld [vmem:[%s5 + $0xb0] sm:$0xff]
  %v241 = vld [vmem:[%s5 + $0xb8] sm:$0xff]
  %v242 = vld [vmem:[%s5 + $0xc0] sm:$0xff]
  %v243 = vld [vmem:[%s5 + $0xc8] sm:$0xff]
  %v244 = vld [vmem:[%s5 + $0xd0] sm:$0xff]
  %v245 = vld [vmem:[%s5 + $0xd8] sm:$0xff]
  %v246 = vld [vmem:[%s5 + $0xe0] sm:$0xff]
  %v247 = vld [vmem:[%s5 + $0xe8] sm:$0xff]
  %v248 = vld [vmem:[%s5 + $0xf0] sm:$0xff]
  %v249 = vld [vmem:[%s5 + $0xf8] sm:$0xff]
  %v250 = vld [vmem:[%s6] sm:$0x3]
  %v252 = vlaneseq
  %v253 = vshrl.u32 %v252, 7
  %v254 = vsub.s32 0, %v253
  %v255 = vrot.slane %v250, %v254
  %v256 = vlaneseq
  %v257 = vshrl.u32 %v256, 7
  %v258 = vsub.s32 1, %v257
  %v259 = vrot.slane %v250, %v258
  %v294 = vunpack.c.l.b16 %v218
  %v295 = vunpack.c.h.b16 %v218
  %v296 = vunpack.c.l.b16 %v219
  %v297 = vunpack.c.h.b16 %v219
  %v298 = vunpack.c.l.b16 %v220
  %v299 = vunpack.c.h.b16 %v220
  %v300 = vunpack.c.l.b16 %v221
  %v301 = vunpack.c.h.b16 %v221
  %v302 = vunpack.c.l.b16 %v222
  %v303 = vunpack.c.h.b16 %v222
  %v304 = vunpack.c.l.b16 %v223
  %v305 = vunpack.c.h.b16 %v223
  %v306 = vunpack.c.l.b16 %v224
  %v307 = vunpack.c.h.b16 %v224
  %v308 = vunpack.c.l.b16 %v225
  %v309 = vunpack.c.h.b16 %v225
  %v310 = vunpack.c.l.b16 %v226
  %v311 = vunpack.c.h.b16 %v226
  %v312 = vunpack.c.l.b16 %v227
  %v313 = vunpack.c.h.b16 %v227
  %v314 = vunpack.c.l.b16 %v228
  %v315 = vunpack.c.h.b16 %v228
  %v316 = vunpack.c.l.b16 %v229
  %v317 = vunpack.c.h.b16 %v229
  %v318 = vunpack.c.l.b16 %v230
  %v319 = vunpack.c.h.b16 %v230
  %v320 = vunpack.c.l.b16 %v231
  %v321 = vunpack.c.h.b16 %v231
  %v322 = vunpack.c.l.b16 %v232
  %v323 = vunpack.c.h.b16 %v232
  %v324 = vunpack.c.l.b16 %v233
  %v325 = vunpack.c.h.b16 %v233
  %v326 = vunpack.c.l.b16 %v234
  %v327 = vunpack.c.h.b16 %v234
  %v328 = vunpack.c.l.b16 %v235
  %v329 = vunpack.c.h.b16 %v235
  %v330 = vunpack.c.l.b16 %v236
  %v331 = vunpack.c.h.b16 %v236
  %v332 = vunpack.c.l.b16 %v237
  %v333 = vunpack.c.h.b16 %v237
  %v334 = vunpack.c.l.b16 %v238
  %v335 = vunpack.c.h.b16 %v238
  %v336 = vunpack.c.l.b16 %v239
  %v337 = vunpack.c.h.b16 %v239
  %v338 = vunpack.c.l.b16 %v240
  %v339 = vunpack.c.h.b16 %v240
  %v340 = vunpack.c.l.b16 %v241
  %v341 = vunpack.c.h.b16 %v241
  %v342 = vunpack.c.l.b16 %v242
  %v343 = vunpack.c.h.b16 %v242
  %v344 = vunpack.c.l.b16 %v243
  %v345 = vunpack.c.h.b16 %v243
  %v346 = vunpack.c.l.b16 %v244
  %v347 = vunpack.c.h.b16 %v244
  %v348 = vunpack.c.l.b16 %v245
  %v349 = vunpack.c.h.b16 %v245
  %v350 = vunpack.c.l.b16 %v246
  %v351 = vunpack.c.h.b16 %v246
  %v352 = vunpack.c.l.b16 %v247
  %v353 = vunpack.c.h.b16 %v247
  %v354 = vunpack.c.l.b16 %v248
  %v355 = vunpack.c.h.b16 %v248
  %v356 = vunpack.c.l.b16 %v249
  %v357 = vunpack.c.h.b16 %v249
  %v358 = vpack.c.b16 %v296, %v294
  %v359 = vpack.c.b16 %v297, %v295
  %v360 = vpack.c.b16 %v300, %v298
  %v361 = vpack.c.b16 %v301, %v299
  %v362 = vpack.c.b16 %v304, %v302
  %v363 = vpack.c.b16 %v305, %v303
  %v364 = vpack.c.b16 %v308, %v306
  %v365 = vpack.c.b16 %v309, %v307
  %v366 = vpack.c.b16 %v312, %v310
  %v367 = vpack.c.b16 %v313, %v311
  %v368 = vpack.c.b16 %v316, %v314
  %v369 = vpack.c.b16 %v317, %v315
  %v370 = vpack.c.b16 %v320, %v318
  %v371 = vpack.c.b16 %v321, %v319
  %v372 = vpack.c.b16 %v324, %v322
  %v373 = vpack.c.b16 %v325, %v323
  %v374 = vpack.c.b16 %v328, %v326
  %v375 = vpack.c.b16 %v329, %v327
  %v376 = vpack.c.b16 %v332, %v330
  %v377 = vpack.c.b16 %v333, %v331
  %v378 = vpack.c.b16 %v336, %v334
  %v379 = vpack.c.b16 %v337, %v335
  %v380 = vpack.c.b16 %v340, %v338
  %v381 = vpack.c.b16 %v341, %v339
  %v382 = vpack.c.b16 %v344, %v342
  %v383 = vpack.c.b16 %v345, %v343
  %v384 = vpack.c.b16 %v348, %v346
  %v385 = vpack.c.b16 %v349, %v347
  %v386 = vpack.c.b16 %v352, %v350
  %v387 = vpack.c.b16 %v353, %v351
  %v388 = vpack.c.b16 %v356, %v354
  %v389 = vpack.c.b16 %v357, %v355
  %422 = vmatprep.subr.bf16.mxu0 %v359
  %423 = vmatpush1.bf16.msra.mxu0 %v358
  %424 = vmatprep.subr.bf16.mxu0 %v361
  %425 = vmatpush1.bf16.msra.mxu0 %v360
  %426 = vmatprep.subr.bf16.mxu0 %v363
  %427 = vmatpush1.bf16.msra.mxu0 %v362
  %428 = vmatprep.subr.bf16.mxu0 %v365
  %429 = vmatpush1.bf16.msra.mxu0 %v364
  %430 = vmatprep.subr.bf16.mxu0 %v367
  %431 = vmatpush1.bf16.msra.mxu0 %v366
  %432 = vmatprep.subr.bf16.mxu0 %v369
  %433 = vmatpush1.bf16.msra.mxu0 %v368
  %434 = vmatprep.subr.bf16.mxu0 %v371
  %435 = vmatpush1.bf16.msra.mxu0 %v370
  %436 = vmatprep.subr.bf16.mxu0 %v373
  %437 = vmatpush1.bf16.msra.mxu0 %v372
  %438 = vmatprep.subr.bf16.mxu0 %v375
  %439 = vmatpush1.bf16.msra.mxu0 %v374
  %440 = vmatprep.subr.bf16.mxu0 %v377
  %441 = vmatpush1.bf16.msra.mxu0 %v376
  %442 = vmatprep.subr.bf16.mxu0 %v379
  %443 = vmatpush1.bf16.msra.mxu0 %v378
  %444 = vmatprep.subr.bf16.mxu0 %v381
  %445 = vmatpush1.bf16.msra.mxu0 %v380
  %446 = vmatprep.subr.bf16.mxu0 %v383
  %447 = vmatpush1.bf16.msra.mxu0 %v382
  %448 = vmatprep.subr.bf16.mxu0 %v385
  %449 = vmatpush1.bf16.msra.mxu0 %v384
  %450 = vmatprep.subr.bf16.mxu0 %v387
  %451 = vmatpush1.bf16.msra.mxu0 %v386
  %452 = vmatprep.subr.bf16.mxu0 %v389
  %453 = vmatpush1.bf16.msra.mxu0 %v388
  %454 = vmatprep.mubr.bf16.mxu0 %v215
  %455 = vmatmul.mubr.bf16.gmra.mrb[0].mxu0 %v214
  %v456 = vpop.f32.mrb[0].mxu0
  %v457 = vadd.f32 %v255, %v456
  %v458 = vpop.f32.mrb[0].mxu0
  %v459 = vadd.f32 %v259, %v458
  %v460 = vpop.f32.mrb[0].mxu0
  %v461 = vadd.f32 %v255, %v460
  %v462 = vpop.f32.mrb[0].mxu0
  %v463 = vadd.f32 %v259, %v462
  %464 = vmatprep.mubr.bf16.mxu0 %v217
  %465 = vmatmul.mubr.bf16.gmra.mrb[0].mxu0 %v216
  %v466 = vpop.f32.mrb[0].mxu0
  %v467 = vadd.f32 %v255, %v466
  %v468 = vpop.f32.mrb[0].mxu0
  %v469 = vadd.f32 %v259, %v468
  %v470 = vpop.f32.mrb[0].mxu0
  %v471 = vpop.f32.mrb[0].mxu0
  %472 = vdwg.mxu0
  %473 = vst [vmem:[%s7] sm:$0xff] %v457
  %474 = vst [vmem:[%s7 + $0x8] sm:$0xff] %v459
  %475 = vst [vmem:[%s7 + $0x10] sm:$0xff] %v461
  %476 = vst [vmem:[%s7 + $0x18] sm:$0xff] %v463
  %477 = vst [vmem:[%s7 + $0x20] sm:$0xff] %v467
  %478 = vst [vmem:[%s7 + $0x28] sm:$0xff] %v469
  // Predicated region
  $region30: #{joiner_forward.1} parent=0 // pred_check
    _
  $region31: #{joiner_forward.1} parent=0 // pred_check_branch
    %480 = sbr.rel (0) target = $region33
  $region32: #{joiner_forward.1} parent=0 // pred_region
    _
  $region33: #{joiner_forward.1} parent=0 // pred_fallthru
    _
  // Predicated region
  $region34: #{joiner_forward.1} parent=0 // pred_check
    _
  $region35: #{joiner_forward.1} parent=0 // pred_check_branch
    %482 = sbr.rel (0) target = $region37
  $region36: #{joiner_forward.1} parent=0 // pred_region
    _
  $region37: #{joiner_forward.1} parent=0 // pred_fallthru
    _

</llo_original>
